<compile_context>
chip_gen: v7x
topology: tpu7x:2x2x1
jax: 0.10.0
libtpu: 0.0.40
codegen_flags: <defaults>
</compile_context>

<pallas_src>
import functools
import math

import jax
import jax.numpy as jnp
from jax.experimental import pallas as pl
from jax.experimental.pallas import tpu as pltpu

_EPS = 1e-12  # matches torch.nn.functional.normalize default eps
_VMEM_LIMIT = 32 * 1024 * 1024  # tiles use far less; safe on v5e/v6e/v7x


def _round_up(x, m):
    return (x + m - 1) // m * m


# ----------------------------- Pallas kernels ------------------------------

def _x_norm_kernel(x_ref, o_ref):
    # Row-wise L2 normalization of a [TM, Kp] activation tile -> bf16.
    x = x_ref[...]
    inv = jax.lax.rsqrt(jnp.maximum(jnp.sum(x * x, axis=-1, keepdims=True),
                                    _EPS * _EPS))
    o_ref[...] = (x * inv).astype(o_ref.dtype)


def _w_normt_kernel(w_ref, o_ref):
    # Row-wise L2 normalization of a [TN, Kp] weight tile, stored transposed
    # ([Kp, TN]) in bf16 so the main kernel does a plain NN-layout MXU matmul.
    w = w_ref[...]
    inv = jax.lax.rsqrt(jnp.maximum(jnp.sum(w * w, axis=-1, keepdims=True),
                                    _EPS * _EPS))
    o_ref[...] = (w * inv).T.astype(o_ref.dtype)


def _cosface_kernel(xn_ref, lab_ref, wt_ref, o_ref, *, s, m, tn):
    # xn_ref: [TM, Kp] bf16 (pre-normalized), lab_ref: [TM, 1] int32,
    # wt_ref: [Kp, TN] bf16 (pre-normalized, transposed).
    cosine = jnp.dot(xn_ref[...], wt_ref[...],
                     preferred_element_type=jnp.float32)          # [TM, TN] f32

    # Additive cosine margin at the label column of this N tile (iota-compare,
    # no scatter needed).
    j = pl.program_id(1)
    col = jax.lax.broadcasted_iota(jnp.int32, cosine.shape, 1) + j * tn
    one_hot = (col == lab_ref[...]).astype(jnp.float32)           # [TM,1] -> [TM,TN]

    o_ref[...] = s * (cosine - m * one_hot)


# ----------------------------- wrappers -------------------------------------

def _normalize_x(x_pad, tile_rows):
    mp, kp = x_pad.shape
    return pl.pallas_call(
        _x_norm_kernel,
        out_shape=jax.ShapeDtypeStruct((mp, kp), jnp.bfloat16),
        grid=(mp // tile_rows,),
        in_specs=[pl.BlockSpec((tile_rows, kp), lambda i: (i, 0))],
        out_specs=pl.BlockSpec((tile_rows, kp), lambda i: (i, 0)),
        compiler_params=pltpu.CompilerParams(
            dimension_semantics=("parallel",),
            vmem_limit_bytes=_VMEM_LIMIT),
    )(x_pad)


def _normalize_weight_t(w_pad, tile_rows):
    npad, kp = w_pad.shape
    return pl.pallas_call(
        _w_normt_kernel,
        out_shape=jax.ShapeDtypeStruct((kp, npad), jnp.bfloat16),
        grid=(npad // tile_rows,),
        in_specs=[pl.BlockSpec((tile_rows, kp), lambda i: (i, 0))],
        out_specs=pl.BlockSpec((kp, tile_rows), lambda i: (0, i)),
        compiler_params=pltpu.CompilerParams(
            dimension_semantics=("parallel",),
            vmem_limit_bytes=_VMEM_LIMIT),
    )(w_pad)


def cosface_forward(x, label, weight, *, s=64.0, m=0.35, tm=256, tn=512):
    """CosFace logits.  x: [M, K] f32, label: [M] int, weight: [N, K] f32."""
    x = x.astype(jnp.float32)
    weight = weight.astype(jnp.float32)
    M, K = x.shape
    N, K2 = weight.shape
    assert K == K2, (K, K2)

    # Padded / tiled dims: K -> multiple of 128, N tile lane-dense (multiple of 128),
    # M tile aligned to 16 sublanes (bf16 packing of the normalized-x intermediate).
    Kp = _round_up(K, 128)
    TM = min(tm, _round_up(M, 16))
    Mp = _round_up(M, TM)
    TN = min(tn, _round_up(N, 128))
    Np = _round_up(N, TN)

    x_p = jnp.pad(x, ((0, Mp - M), (0, Kp - K)))
    w_p = jnp.pad(weight, ((0, Np - N), (0, Kp - K)))
    lab_p = jnp.pad(label.reshape(-1, 1).astype(jnp.int32), ((0, Mp - M), (0, 0)))

    # One-pass preprocessing (zero-padded rows stay zero -> cosine 0, sliced off).
    xn = _normalize_x(x_p, TM)                 # [Mp, Kp]  bf16
    wt = _normalize_weight_t(w_p, TN)          # [Kp, Np]  bf16, transposed

    out = pl.pallas_call(
        functools.partial(_cosface_kernel, s=float(s), m=float(m), tn=TN),
        out_shape=jax.ShapeDtypeStruct((Mp, Np), jnp.float32),
        grid=(Mp // TM, Np // TN),
        in_specs=[
            pl.BlockSpec((TM, Kp), lambda i, j: (i, 0)),   # xn tile: constant over j
            pl.BlockSpec((TM, 1), lambda i, j: (i, 0)),    # labels for this row tile
            pl.BlockSpec((Kp, TN), lambda i, j: (0, j)),   # normalized W.T tile
        ],
        out_specs=pl.BlockSpec((TM, TN), lambda i, j: (i, j)),
        compiler_params=pltpu.CompilerParams(
            dimension_semantics=("parallel", "parallel"),
            vmem_limit_bytes=_VMEM_LIMIT),
    )(xn, lab_p, wt)

    return out[:M, :N]


# ----------------------------- main ------------------------------------------

if __name__ == "__main__":
    in_features, out_features = 256, 200
    batch = 8
    s, m = 64.0, 0.35

    key = jax.random.PRNGKey(0)
    kx, kw, kl = jax.random.split(key, 3)

    x = jax.random.normal(kx, (batch, in_features), dtype=jnp.float32)
    # nn.init.xavier_uniform_ on weight of shape (out_features, in_features)
    limit = math.sqrt(6.0 / (in_features + out_features))
    weight = jax.random.uniform(kw, (out_features, in_features), jnp.float32,
                                -limit, limit)
    label = jax.random.randint(kl, (batch,), 0, out_features, dtype=jnp.int32)

    fwd = jax.jit(functools.partial(cosface_forward, s=s, m=m))
    out = fwd(x, label, weight)
    jax.block_until_ready(out)

    # Pure-JAX references (eval semantics of the PyTorch module, device_id=None path).
    xn_f = x / jnp.maximum(jnp.linalg.norm(x, axis=1, keepdims=True), _EPS)
    wn_f = weight / jnp.maximum(jnp.linalg.norm(weight, axis=1, keepdims=True), _EPS)
    one_hot = jax.nn.one_hot(label, out_features, dtype=jnp.float32)

    cos_f32 = jnp.dot(xn_f, wn_f.T, precision=jax.lax.Precision.HIGHEST)
    ref_f32 = s * (one_hot * (cos_f32 - m) + (1.0 - one_hot) * cos_f32)

    # Precision-matched reference (bf16 MXU operands, f32 accumulation like the kernel).
    cos_bf = jnp.dot(xn_f.astype(jnp.bfloat16), wn_f.astype(jnp.bfloat16).T,
                     preferred_element_type=jnp.float32)
    ref_bf = s * (one_hot * (cos_bf - m) + (1.0 - one_hot) * cos_bf)

    assert out.shape == (batch, out_features), out.shape
    assert bool(jnp.all(jnp.isfinite(out)))
    err_matched = float(jnp.max(jnp.abs(out - ref_bf)))
    err_f32 = float(jnp.max(jnp.abs(out - ref_f32)))
    # bf16 cosine inputs -> logits agree with the f32 reference to well under 1
    # on the s=64 scale, and tightly with the precision-matched reference.
    assert err_matched < 0.1, f"max abs error vs matched-precision reference: {err_matched}"
    assert err_f32 < 1.0, f"max abs error vs f32 reference: {err_f32}"
    print("KERNEL_OK")
</pallas_src>

<mosaic_0001>
module attributes {stable_mosaic.version = 11 : i64} {
  func.func @_w_normt_kernel(%arg0: i32, %arg1: memref<256x256xf32, #tpu.memory_space<vmem>>, %arg2: memref<256x256xbf16, #tpu.memory_space<vmem>>) attributes {dimension_semantics = [#tpu.dimension_semantics<parallel>], iteration_bounds = array<i64: 1>, scalar_prefetch = 0 : i64, scratch_operands = 0 : i64, tpu.core_type = #tpu.core_type<tc>, window_params = [{transform_indices = @transform_0, window_bounds = array<i64: 256, 256>}, {transform_indices = @transform_1, window_bounds = array<i64: 256, 256>}]} {
    %c0 = arith.constant 0 : index
    %c0_0 = arith.constant 0 : index
    %0 = vector.load %arg1[%c0, %c0_0] : memref<256x256xf32, #tpu.memory_space<vmem>>, vector<256x256xf32>
    %1 = arith.mulf %0, %0 : vector<256x256xf32>
    %cst = arith.constant dense<0.000000e+00> : vector<256xf32>
    %2 = vector.multi_reduction <add>, %1, %cst [1] : vector<256x256xf32> to vector<256xf32>
    %3 = vector.shape_cast %2 : vector<256xf32> to vector<256x1xf32>
    %cst_1 = arith.constant 1.000000e-24 : f32
    %4 = vector.broadcast %cst_1 : f32 to vector<256x1xf32>
    %5 = arith.maximumf %3, %4 : vector<256x1xf32>
    %6 = math.rsqrt %5 : vector<256x1xf32>
    %7 = vector.broadcast %6 : vector<256x1xf32> to vector<256x256xf32>
    %8 = arith.mulf %0, %7 : vector<256x256xf32>
    %9 = tpu.transpose %8, [1, 0] : vector<256x256xf32> -> vector<256x256xf32>
    %10 = arith.truncf %9 : vector<256x256xf32> to vector<256x256xbf16>
    %c0_2 = arith.constant 0 : index
    %c0_3 = arith.constant 0 : index
    %11 = vector.load %arg2[%c0_2, %c0_3] : memref<256x256xbf16, #tpu.memory_space<vmem>>, vector<256x256xbf16>
    tpu.vector_store %arg2[%c0_2, %c0_3], %10 {strides = array<i32>} : memref<256x256xbf16, #tpu.memory_space<vmem>>, vector<256x256xbf16>,
    return
  }
  func.func @transform_0(%arg0: i32) -> (i32, i32) {
    %c0_i32 = arith.constant 0 : i32
    %c0_i32_0 = arith.constant 0 : i32
    return %arg0, %c0_i32 : i32, i32
  }
  func.func @transform_1(%arg0: i32) -> (i32, i32) {
    %c0_i32 = arith.constant 0 : i32
    %c0_i32_0 = arith.constant 0 : i32
    return %c0_i32, %arg0 : i32, i32
  }
}

module attributes {stable_mosaic.version = 11 : i64} {
  func.func @_x_norm_kernel(%arg0: i32, %arg1: memref<16x256xf32, #tpu.memory_space<vmem>>, %arg2: memref<16x256xbf16, #tpu.memory_space<vmem>>) attributes {dimension_semantics = [#tpu.dimension_semantics<parallel>], iteration_bounds = array<i64: 1>, scalar_prefetch = 0 : i64, scratch_operands = 0 : i64, tpu.core_type = #tpu.core_type<tc>, window_params = [{transform_indices = @transform_0, window_bounds = array<i64: 16, 256>}, {transform_indices = @transform_1, window_bounds = array<i64: 16, 256>}]} {
    %c0 = arith.constant 0 : index
    %c0_0 = arith.constant 0 : index
    %0 = vector.load %arg1[%c0, %c0_0] : memref<16x256xf32, #tpu.memory_space<vmem>>, vector<16x256xf32>
    %1 = arith.mulf %0, %0 : vector<16x256xf32>
    %cst = arith.constant dense<0.000000e+00> : vector<16xf32>
    %2 = vector.multi_reduction <add>, %1, %cst [1] : vector<16x256xf32> to vector<16xf32>
    %3 = vector.shape_cast %2 : vector<16xf32> to vector<16x1xf32>
    %cst_1 = arith.constant 1.000000e-24 : f32
    %4 = vector.broadcast %cst_1 : f32 to vector<16x1xf32>
    %5 = arith.maximumf %3, %4 : vector<16x1xf32>
    %6 = math.rsqrt %5 : vector<16x1xf32>
    %7 = vector.broadcast %6 : vector<16x1xf32> to vector<16x256xf32>
    %8 = arith.mulf %0, %7 : vector<16x256xf32>
    %9 = arith.truncf %8 : vector<16x256xf32> to vector<16x256xbf16>
    %c0_2 = arith.constant 0 : index
    %c0_3 = arith.constant 0 : index
    %10 = vector.load %arg2[%c0_2, %c0_3] : memref<16x256xbf16, #tpu.memory_space<vmem>>, vector<16x256xbf16>
    tpu.vector_store %arg2[%c0_2, %c0_3], %9 {strides = array<i32>} : memref<16x256xbf16, #tpu.memory_space<vmem>>, vector<16x256xbf16>,
    return
  }
  func.func @transform_0(%arg0: i32) -> (i32, i32) {
    %c0_i32 = arith.constant 0 : i32
    %c0_i32_0 = arith.constant 0 : i32
    return %arg0, %c0_i32 : i32, i32
  }
  func.func @transform_1(%arg0: i32) -> (i32, i32) {
    %c0_i32 = arith.constant 0 : i32
    %c0_i32_0 = arith.constant 0 : i32
    return %arg0, %c0_i32 : i32, i32
  }
}

module attributes {stable_mosaic.version = 11 : i64} {
  func.func @_cosface_kernel(%arg0: i32, %arg1: i32, %arg2: memref<16x256xbf16, #tpu.memory_space<vmem>>, %arg3: memref<16x1xi32, #tpu.memory_space<vmem>>, %arg4: memref<256x256xbf16, #tpu.memory_space<vmem>>, %arg5: memref<16x256xf32, #tpu.memory_space<vmem>>) attributes {dimension_semantics = [#tpu.dimension_semantics<parallel>, #tpu.dimension_semantics<parallel>], iteration_bounds = array<i64: 1, 1>, scalar_prefetch = 0 : i64, scratch_operands = 0 : i64, tpu.core_type = #tpu.core_type<tc>, window_params = [{transform_indices = @transform_0, window_bounds = array<i64: 16, 256>}, {transform_indices = @transform_1, window_bounds = array<i64: 16, 1>}, {transform_indices = @transform_2, window_bounds = array<i64: 256, 256>}, {transform_indices = @transform_3, window_bounds = array<i64: 16, 256>}]} {
    %c0 = arith.constant 0 : index
    %c0_0 = arith.constant 0 : index
    %0 = vector.load %arg2[%c0, %c0_0] : memref<16x256xbf16, #tpu.memory_space<vmem>>, vector<16x256xbf16>
    %c0_1 = arith.constant 0 : index
    %c0_2 = arith.constant 0 : index
    %1 = vector.load %arg4[%c0_1, %c0_2] : memref<256x256xbf16, #tpu.memory_space<vmem>>, vector<256x256xbf16>
    %cst = arith.constant dense<0.000000e+00> : vector<16x256xf32>
    %2 = tpu.matmul %0, %1, %cst {dimension_numbers = #tpu.dot_dimension_numbers<[1], [0], [0], [1], [0, 0, 1, 1], [], []>} : vector<16x256xbf16>, vector<256x256xbf16>, vector<16x256xf32> -> vector<16x256xf32>
    %3 = tpu.iota {dimensions = array<i32: 1>} : vector<16x256xi32>
    %c256_i32 = arith.constant 256 : i32
    %4 = arith.muli %arg1, %c256_i32 : i32
    %5 = vector.broadcast %4 : i32 to vector<16x256xi32>
    %6 = arith.addi %3, %5 : vector<16x256xi32>
    %c0_3 = arith.constant 0 : index
    %c0_4 = arith.constant 0 : index
    %7 = vector.load %arg3[%c0_3, %c0_4] : memref<16x1xi32, #tpu.memory_space<vmem>>, vector<16x1xi32>
    %8 = vector.broadcast %7 : vector<16x1xi32> to vector<16x256xi32>
    %9 = arith.cmpi eq, %6, %8 : vector<16x256xi32>
    %10 = arith.extui %9 : vector<16x256xi1> to vector<16x256xi32>
    %11 = arith.sitofp %10 : vector<16x256xi32> to vector<16x256xf32>
    %cst_5 = arith.constant 3.500000e-01 : f32
    %12 = vector.broadcast %cst_5 : f32 to vector<16x256xf32>
    %13 = arith.mulf %12, %11 : vector<16x256xf32>
    %14 = arith.subf %2, %13 : vector<16x256xf32>
    %cst_6 = arith.constant 6.400000e+01 : f32
    %15 = vector.broadcast %cst_6 : f32 to vector<16x256xf32>
    %16 = arith.mulf %15, %14 : vector<16x256xf32>
    %c0_7 = arith.constant 0 : index
    %c0_8 = arith.constant 0 : index
    %17 = vector.load %arg5[%c0_7, %c0_8] : memref<16x256xf32, #tpu.memory_space<vmem>>, vector<16x256xf32>
    tpu.vector_store %arg5[%c0_7, %c0_8], %16 {strides = array<i32>} : memref<16x256xf32, #tpu.memory_space<vmem>>, vector<16x256xf32>,
    return
  }
  func.func @transform_0(%arg0: i32, %arg1: i32) -> (i32, i32) {
    %c0_i32 = arith.constant 0 : i32
    %c0_i32_0 = arith.constant 0 : i32
    return %arg0, %c0_i32 : i32, i32
  }
  func.func @transform_1(%arg0: i32, %arg1: i32) -> (i32, i32) {
    %c0_i32 = arith.constant 0 : i32
    %c0_i32_0 = arith.constant 0 : i32
    return %arg0, %c0_i32 : i32, i32
  }
  func.func @transform_2(%arg0: i32, %arg1: i32) -> (i32, i32) {
    %c0_i32 = arith.constant 0 : i32
    %c0_i32_0 = arith.constant 0 : i32
    return %c0_i32, %arg1 : i32, i32
  }
  func.func @transform_3(%arg0: i32, %arg1: i32) -> (i32, i32) {
    %c0_i32 = arith.constant 0 : i32
    return %arg0, %arg1 : i32, i32
  }
}

</mosaic_0001>

<llo_original>
// kernel: cosface_forward.3
$region0: #{cosface_forward.3}
  #allocation0 [shape = 'u32[]', space=smem, size = 0x4, offset = 0x4, fixed_abs, tag = 'smem constant byte address 0x4 - core index']
  #allocation1 [shape = 'u32[144,128]{1,0:T(1,128)}', space=vmem, size = 0x12000, scoped, tag = 'internal scratch']
  %s0 = inlined_call_operand.vmem [shape: f32[16,256], index: 0, kind: input, shape index: {}]
  %s1 = inlined_call_operand.vmem [shape: bf16[16,256], index: 1, kind: output, shape index: {}]
  %s2 = sld [smem:[#allocation0]]
  $region14: #{cosface_forward.3} parent=0
    _
  %s4 = ssub.s32 1, %s2
  %s5 = scalar_select 0, %s4, %s2
  // Predicated region
  $region2: #{cosface_forward.3} parent=0 // pred_check
    _
  $region3: #{cosface_forward.3} parent=0 // pred_check_branch
    %7 = sbr.rel (0) target = $region5
  $region4: #{cosface_forward.3} parent=0 // pred_region
    _
  $region5: #{cosface_forward.3} parent=0 // pred_fallthru
    _
  %v8 = vld [vmem:[%s0] sm:$0xff]
  %v9 = vld [vmem:[%s0 + $0x8] sm:$0xff]
  %v10 = vld [vmem:[%s0 + $0x10] sm:$0xff]
  %v11 = vld [vmem:[%s0 + $0x18] sm:$0xff]
  %v12 = vmul.f32 %v8, %v8
  %v13 = vmul.f32 %v9, %v9
  %v14 = vmul.f32 %v10, %v10
  %v15 = vmul.f32 %v11, %v11
  %v16 = vadd.f32 %v12, %v13
  %17 = vadd.xlane.f32.xlu0 %v16
  %v18 = vpop.xlane.xlu0 %17
  %v19 = vadd.f32 %v14, %v15
  %20 = vadd.xlane.f32.xlu0 %v19
  %v21 = vpop.xlane.xlu0 %20
  %v22 = vmax.f32 %v18, 1e-24
  %v23 = vmax.f32 %v21, 1e-24
  %v24 = vrsqrt.pop %v22
  %v25 = vrsqrt.pop %v23
  %v26 = vmul.f32 %v8, %v24
  %v27 = vmul.f32 %v9, %v24
  %v28 = vmul.f32 %v10, %v25
  %v29 = vmul.f32 %v11, %v25
  %v30 = vpack.c.bf16 %v28, %v26
  %v31 = vpack.c.bf16 %v29, %v27
  %v34 = vunpack.c.l.b16 %v30
  %v35 = vunpack.c.l.b16 %v31
  %v36 = vunpack.c.h.b16 %v30
  %v37 = vunpack.c.h.b16 %v31
  %v38 = vpack.c.b16 %v35, %v34
  %v39 = vpack.c.b16 %v37, %v36
  %42 = vst [vmem:[%s1] sm:$0xff] %v38
  %43 = vst [vmem:[%s1 + $0x8] sm:$0xff] %v39
  // Predicated region
  $region6: #{cosface_forward.3} parent=0 // pred_check
    _
  $region7: #{cosface_forward.3} parent=0 // pred_check_branch
    %45 = sbr.rel (0) target = $region9
  $region8: #{cosface_forward.3} parent=0 // pred_region
    _
  $region9: #{cosface_forward.3} parent=0 // pred_fallthru
    _
  // Predicated region
  $region10: #{cosface_forward.3} parent=0 // pred_check
    _
  $region11: #{cosface_forward.3} parent=0 // pred_check_branch
    %47 = sbr.rel (0) target = $region13
  $region12: #{cosface_forward.3} parent=0 // pred_region
    _
  $region13: #{cosface_forward.3} parent=0 // pred_fallthru
    _

// kernel: cosface_forward.4
$region0: #{cosface_forward.4}
  #allocation0 [shape = 'u32[]', space=smem, size = 0x4, offset = 0x4, fixed_abs, tag = 'smem constant byte address 0x4 - core index']
  #allocation1 [shape = 'u32[144,128]{1,0:T(1,128)}', space=vmem, size = 0x12000, scoped, tag = 'internal scratch']
  %s0 = inlined_call_operand.vmem [shape: f32[256,256], index: 0, kind: input, shape index: {}]
  %s1 = inlined_call_operand.vmem [shape: bf16[256,256], index: 1, kind: output, shape index: {}]
  %s2 = sld [smem:[#allocation0]]
  $region14: #{cosface_forward.4} parent=0
    _
  %s4 = ssub.s32 1, %s2
  %s5 = scalar_select 0, %s4, %s2
  // Predicated region
  $region2: #{cosface_forward.4} parent=0 // pred_check
    _
  $region3: #{cosface_forward.4} parent=0 // pred_check_branch
    %7 = sbr.rel (0) target = $region5
  $region4: #{cosface_forward.4} parent=0 // pred_region
    _
  $region5: #{cosface_forward.4} parent=0 // pred_fallthru
    _
  %v8 = vld [vmem:[%s0] sm:$0xff]
  %v9 = vld [vmem:[%s0 + $0x8] sm:$0xff]
  %v10 = vld [vmem:[%s0 + $0x10] sm:$0xff]
  %v11 = vld [vmem:[%s0 + $0x18] sm:$0xff]
  %v12 = vld [vmem:[%s0 + $0x20] sm:$0xff]
  %v13 = vld [vmem:[%s0 + $0x28] sm:$0xff]
  %v14 = vld [vmem:[%s0 + $0x30] sm:$0xff]
  %v15 = vld [vmem:[%s0 + $0x38] sm:$0xff]
  %v16 = vld [vmem:[%s0 + $0x40] sm:$0xff]
  %v17 = vld [vmem:[%s0 + $0x48] sm:$0xff]
  %v18 = vld [vmem:[%s0 + $0x50] sm:$0xff]
  %v19 = vld [vmem:[%s0 + $0x58] sm:$0xff]
  %v20 = vld [vmem:[%s0 + $0x60] sm:$0xff]
  %v21 = vld [vmem:[%s0 + $0x68] sm:$0xff]
  %v22 = vld [vmem:[%s0 + $0x70] sm:$0xff]
  %v23 = vld [vmem:[%s0 + $0x78] sm:$0xff]
  %v24 = vld [vmem:[%s0 + $0x80] sm:$0xff]
  %v25 = vld [vmem:[%s0 + $0x88] sm:$0xff]
  %v26 = vld [vmem:[%s0 + $0x90] sm:$0xff]
  %v27 = vld [vmem:[%s0 + $0x98] sm:$0xff]
  %v28 = vld [vmem:[%s0 + $0xa0] sm:$0xff]
  %v29 = vld [vmem:[%s0 + $0xa8] sm:$0xff]
  %v30 = vld [vmem:[%s0 + $0xb0] sm:$0xff]
  %v31 = vld [vmem:[%s0 + $0xb8] sm:$0xff]
  %v32 = vld [vmem:[%s0 + $0xc0] sm:$0xff]
  %v33 = vld [vmem:[%s0 + $0xc8] sm:$0xff]
  %v34 = vld [vmem:[%s0 + $0xd0] sm:$0xff]
  %v35 = vld [vmem:[%s0 + $0xd8] sm:$0xff]
  %v36 = vld [vmem:[%s0 + $0xe0] sm:$0xff]
  %v37 = vld [vmem:[%s0 + $0xe8] sm:$0xff]
  %v38 = vld [vmem:[%s0 + $0xf0] sm:$0xff]
  %v39 = vld [vmem:[%s0 + $0xf8] sm:$0xff]
  %v40 = vld [vmem:[%s0 + $0x100] sm:$0xff]
  %v41 = vld [vmem:[%s0 + $0x108] sm:$0xff]
  %v42 = vld [vmem:[%s0 + $0x110] sm:$0xff]
  %v43 = vld [vmem:[%s0 + $0x118] sm:$0xff]
  %v44 = vld [vmem:[%s0 + $0x120] sm:$0xff]
  %v45 = vld [vmem:[%s0 + $0x128] sm:$0xff]
  %v46 = vld [vmem:[%s0 + $0x130] sm:$0xff]
  %v47 = vld [vmem:[%s0 + $0x138] sm:$0xff]
  %v48 = vld [vmem:[%s0 + $0x140] sm:$0xff]
  %v49 = vld [vmem:[%s0 + $0x148] sm:$0xff]
  %v50 = vld [vmem:[%s0 + $0x150] sm:$0xff]
  %v51 = vld [vmem:[%s0 + $0x158] sm:$0xff]
  %v52 = vld [vmem:[%s0 + $0x160] sm:$0xff]
  %v53 = vld [vmem:[%s0 + $0x168] sm:$0xff]
  %v54 = vld [vmem:[%s0 + $0x170] sm:$0xff]
  %v55 = vld [vmem:[%s0 + $0x178] sm:$0xff]
  %v56 = vld [vmem:[%s0 + $0x180] sm:$0xff]
  %v57 = vld [vmem:[%s0 + $0x188] sm:$0xff]
  %v58 = vld [vmem:[%s0 + $0x190] sm:$0xff]
  %v59 = vld [vmem:[%s0 + $0x198] sm:$0xff]
  %v60 = vld [vmem:[%s0 + $0x1a0] sm:$0xff]
  %v61 = vld [vmem:[%s0 + $0x1a8] sm:$0xff]
  %v62 = vld [vmem:[%s0 + $0x1b0] sm:$0xff]
  %v63 = vld [vmem:[%s0 + $0x1b8] sm:$0xff]
  %v64 = vld [vmem:[%s0 + $0x1c0] sm:$0xff]
  %v65 = vld [vmem:[%s0 + $0x1c8] sm:$0xff]
  %v66 = vld [vmem:[%s0 + $0x1d0] sm:$0xff]
  %v67 = vld [vmem:[%s0 + $0x1d8] sm:$0xff]
  %v68 = vld [vmem:[%s0 + $0x1e0] sm:$0xff]
  %v69 = vld [vmem:[%s0 + $0x1e8] sm:$0xff]
  %v70 = vld [vmem:[%s0 + $0x1f0] sm:$0xff]
  %v71 = vld [vmem:[%s0 + $0x1f8] sm:$0xff]
  %v72 = vmul.f32 %v8, %v8
  %v73 = vmul.f32 %v9, %v9
  %v74 = vmul.f32 %v10, %v10
  %v75 = vmul.f32 %v11, %v11
  %v76 = vmul.f32 %v12, %v12
  %v77 = vmul.f32 %v13, %v13
  %v78 = vmul.f32 %v14, %v14
  %v79 = vmul.f32 %v15, %v15
  %v80 = vmul.f32 %v16, %v16
  %v81 = vmul.f32 %v17, %v17
  %v82 = vmul.f32 %v18, %v18
  %v83 = vmul.f32 %v19, %v19
  %v84 = vmul.f32 %v20, %v20
  %v85 = vmul.f32 %v21, %v21
  %v86 = vmul.f32 %v22, %v22
  %v87 = vmul.f32 %v23, %v23
  %v88 = vmul.f32 %v24, %v24
  %v89 = vmul.f32 %v25, %v25
  %v90 = vmul.f32 %v26, %v26
  %v91 = vmul.f32 %v27, %v27
  %v92 = vmul.f32 %v28, %v28
  %v93 = vmul.f32 %v29, %v29
  %v94 = vmul.f32 %v30, %v30
  %v95 = vmul.f32 %v31, %v31
  %v96 = vmul.f32 %v32, %v32
  %v97 = vmul.f32 %v33, %v33
  %v98 = vmul.f32 %v34, %v34
  %v99 = vmul.f32 %v35, %v35
  %v100 = vmul.f32 %v36, %v36
  %v101 = vmul.f32 %v37, %v37
  %v102 = vmul.f32 %v38, %v38
  %v103 = vmul.f32 %v39, %v39
  %v104 = vmul.f32 %v40, %v40
  %v105 = vmul.f32 %v41, %v41
  %v106 = vmul.f32 %v42, %v42
  %v107 = vmul.f32 %v43, %v43
  %v108 = vmul.f32 %v44, %v44
  %v109 = vmul.f32 %v45, %v45
  %v110 = vmul.f32 %v46, %v46
  %v111 = vmul.f32 %v47, %v47
  %v112 = vmul.f32 %v48, %v48
  %v113 = vmul.f32 %v49, %v49
  %v114 = vmul.f32 %v50, %v50
  %v115 = vmul.f32 %v51, %v51
  %v116 = vmul.f32 %v52, %v52
  %v117 = vmul.f32 %v53, %v53
  %v118 = vmul.f32 %v54, %v54
  %v119 = vmul.f32 %v55, %v55
  %v120 = vmul.f32 %v56, %v56
  %v121 = vmul.f32 %v57, %v57
  %v122 = vmul.f32 %v58, %v58
  %v123 = vmul.f32 %v59, %v59
  %v124 = vmul.f32 %v60, %v60
  %v125 = vmul.f32 %v61, %v61
  %v126 = vmul.f32 %v62, %v62
  %v127 = vmul.f32 %v63, %v63
  %v128 = vmul.f32 %v64, %v64
  %v129 = vmul.f32 %v65, %v65
  %v130 = vmul.f32 %v66, %v66
  %v131 = vmul.f32 %v67, %v67
  %v132 = vmul.f32 %v68, %v68
  %v133 = vmul.f32 %v69, %v69
  %v134 = vmul.f32 %v70, %v70
  %v135 = vmul.f32 %v71, %v71
  %v136 = vadd.f32 %v72, %v73
  %137 = vadd.xlane.f32.xlu0 %v136
  %v138 = vpop.xlane.xlu0 %137
  %v139 = vadd.f32 %v74, %v75
  %140 = vadd.xlane.f32.xlu0 %v139
  %v141 = vpop.xlane.xlu0 %140
  %v142 = vadd.f32 %v76, %v77
  %143 = vadd.xlane.f32.xlu0 %v142
  %v144 = vpop.xlane.xlu0 %143
  %v145 = vadd.f32 %v78, %v79
  %146 = vadd.xlane.f32.xlu0 %v145
  %v147 = vpop.xlane.xlu0 %146
  %v148 = vadd.f32 %v80, %v81
  %149 = vadd.xlane.f32.xlu0 %v148
  %v150 = vpop.xlane.xlu0 %149
  %v151 = vadd.f32 %v82, %v83
  %152 = vadd.xlane.f32.xlu0 %v151
  %v153 = vpop.xlane.xlu0 %152
  %v154 = vadd.f32 %v84, %v85
  %155 = vadd.xlane.f32.xlu0 %v154
  %v156 = vpop.xlane.xlu0 %155
  %v157 = vadd.f32 %v86, %v87
  %158 = vadd.xlane.f32.xlu0 %v157
  %v159 = vpop.xlane.xlu0 %158
  %v160 = vadd.f32 %v88, %v89
  %161 = vadd.xlane.f32.xlu0 %v160
  %v162 = vpop.xlane.xlu0 %161
  %v163 = vadd.f32 %v90, %v91
  %164 = vadd.xlane.f32.xlu0 %v163
  %v165 = vpop.xlane.xlu0 %164
  %v166 = vadd.f32 %v92, %v93
  %167 = vadd.xlane.f32.xlu0 %v166
  %v168 = vpop.xlane.xlu0 %167
  %v169 = vadd.f32 %v94, %v95
  %170 = vadd.xlane.f32.xlu0 %v169
  %v171 = vpop.xlane.xlu0 %170
  %v172 = vadd.f32 %v96, %v97
  %173 = vadd.xlane.f32.xlu0 %v172
  %v174 = vpop.xlane.xlu0 %173
  %v175 = vadd.f32 %v98, %v99
  %176 = vadd.xlane.f32.xlu0 %v175
  %v177 = vpop.xlane.xlu0 %176
  %v178 = vadd.f32 %v100, %v101
  %179 = vadd.xlane.f32.xlu0 %v178
  %v180 = vpop.xlane.xlu0 %179
  %v181 = vadd.f32 %v102, %v103
  %182 = vadd.xlane.f32.xlu0 %v181
  %v183 = vpop.xlane.xlu0 %182
  %v184 = vadd.f32 %v104, %v105
  %185 = vadd.xlane.f32.xlu0 %v184
  %v186 = vpop.xlane.xlu0 %185
  %v187 = vadd.f32 %v106, %v107
  %188 = vadd.xlane.f32.xlu0 %v187
  %v189 = vpop.xlane.xlu0 %188
  %v190 = vadd.f32 %v108, %v109
  %191 = vadd.xlane.f32.xlu0 %v190
  %v192 = vpop.xlane.xlu0 %191
  %v193 = vadd.f32 %v110, %v111
  %194 = vadd.xlane.f32.xlu0 %v193
  %v195 = vpop.xlane.xlu0 %194
  %v196 = vadd.f32 %v112, %v113
  %197 = vadd.xlane.f32.xlu0 %v196
  %v198 = vpop.xlane.xlu0 %197
  %v199 = vadd.f32 %v114, %v115
  %200 = vadd.xlane.f32.xlu0 %v199
  %v201 = vpop.xlane.xlu0 %200
  %v202 = vadd.f32 %v116, %v117
  %203 = vadd.xlane.f32.xlu0 %v202
  %v204 = vpop.xlane.xlu0 %203
  %v205 = vadd.f32 %v118, %v119
  %206 = vadd.xlane.f32.xlu0 %v205
  %v207 = vpop.xlane.xlu0 %206
  %v208 = vadd.f32 %v120, %v121
  %209 = vadd.xlane.f32.xlu0 %v208
  %v210 = vpop.xlane.xlu0 %209
  %v211 = vadd.f32 %v122, %v123
  %212 = vadd.xlane.f32.xlu0 %v211
  %v213 = vpop.xlane.xlu0 %212
  %v214 = vadd.f32 %v124, %v125
  %215 = vadd.xlane.f32.xlu0 %v214
  %v216 = vpop.xlane.xlu0 %215
  %v217 = vadd.f32 %v126, %v127
  %218 = vadd.xlane.f32.xlu0 %v217
  %v219 = vpop.xlane.xlu0 %218
  %v220 = vadd.f32 %v128, %v129
  %221 = vadd.xlane.f32.xlu0 %v220
  %v222 = vpop.xlane.xlu0 %221
  %v223 = vadd.f32 %v130, %v131
  %224 = vadd.xlane.f32.xlu0 %v223
  %v225 = vpop.xlane.xlu0 %224
  %v226 = vadd.f32 %v132, %v133
  %227 = vadd.xlane.f32.xlu0 %v226
  %v228 = vpop.xlane.xlu0 %227
  %v229 = vadd.f32 %v134, %v135
  %230 = vadd.xlane.f32.xlu0 %v229
  %v231 = vpop.xlane.xlu0 %230
  %v232 = vmax.f32 %v138, 1e-24
  %v233 = vmax.f32 %v141, 1e-24
  %v234 = vmax.f32 %v144, 1e-24
  %v235 = vmax.f32 %v147, 1e-24
  %v236 = vmax.f32 %v150, 1e-24
  %v237 = vmax.f32 %v153, 1e-24
  %v238 = vmax.f32 %v156, 1e-24
  %v239 = vmax.f32 %v159, 1e-24
  %v240 = vmax.f32 %v162, 1e-24
  %v241 = vmax.f32 %v165, 1e-24
  %v242 = vmax.f32 %v168, 1e-24
  %v243 = vmax.f32 %v171, 1e-24
  %v244 = vmax.f32 %v174, 1e-24
  %v245 = vmax.f32 %v177, 1e-24
  %v246 = vmax.f32 %v180, 1e-24
  %v247 = vmax.f32 %v183, 1e-24
  %v248 = vmax.f32 %v186, 1e-24
  %v249 = vmax.f32 %v189, 1e-24
  %v250 = vmax.f32 %v192, 1e-24
  %v251 = vmax.f32 %v195, 1e-24
  %v252 = vmax.f32 %v198, 1e-24
  %v253 = vmax.f32 %v201, 1e-24
  %v254 = vmax.f32 %v204, 1e-24
  %v255 = vmax.f32 %v207, 1e-24
  %v256 = vmax.f32 %v210, 1e-24
  %v257 = vmax.f32 %v213, 1e-24
  %v258 = vmax.f32 %v216, 1e-24
  %v259 = vmax.f32 %v219, 1e-24
  %v260 = vmax.f32 %v222, 1e-24
  %v261 = vmax.f32 %v225, 1e-24
  %v262 = vmax.f32 %v228, 1e-24
  %v263 = vmax.f32 %v231, 1e-24
  %v264 = vrsqrt.pop %v232
  %v265 = vrsqrt.pop %v233
  %v266 = vrsqrt.pop %v234
  %v267 = vrsqrt.pop %v235
  %v268 = vrsqrt.pop %v236
  %v269 = vrsqrt.pop %v237
  %v270 = vrsqrt.pop %v238
  %v271 = vrsqrt.pop %v239
  %v272 = vrsqrt.pop %v240
  %v273 = vrsqrt.pop %v241
  %v274 = vrsqrt.pop %v242
  %v275 = vrsqrt.pop %v243
  %v276 = vrsqrt.pop %v244
  %v277 = vrsqrt.pop %v245
  %v278 = vrsqrt.pop %v246
  %v279 = vrsqrt.pop %v247
  %v280 = vrsqrt.pop %v248
  %v281 = vrsqrt.pop %v249
  %v282 = vrsqrt.pop %v250
  %v283 = vrsqrt.pop %v251
  %v284 = vrsqrt.pop %v252
  %v285 = vrsqrt.pop %v253
  %v286 = vrsqrt.pop %v254
  %v287 = vrsqrt.pop %v255
  %v288 = vrsqrt.pop %v256
  %v289 = vrsqrt.pop %v257
  %v290 = vrsqrt.pop %v258
  %v291 = vrsqrt.pop %v259
  %v292 = vrsqrt.pop %v260
  %v293 = vrsqrt.pop %v261
  %v294 = vrsqrt.pop %v262
  %v295 = vrsqrt.pop %v263
  %v296 = vmul.f32 %v8, %v264
  %v297 = vmul.f32 %v9, %v264
  %v298 = vmul.f32 %v10, %v265
  %v299 = vmul.f32 %v11, %v265
  %v300 = vmul.f32 %v12, %v266
  %v301 = vmul.f32 %v13, %v266
  %v302 = vmul.f32 %v14, %v267
  %v303 = vmul.f32 %v15, %v267
  %v304 = vmul.f32 %v16, %v268
  %v305 = vmul.f32 %v17, %v268
  %v306 = vmul.f32 %v18, %v269
  %v307 = vmul.f32 %v19, %v269
  %v308 = vmul.f32 %v20, %v270
  %v309 = vmul.f32 %v21, %v270
  %v310 = vmul.f32 %v22, %v271
  %v311 = vmul.f32 %v23, %v271
  %v312 = vmul.f32 %v24, %v272
  %v313 = vmul.f32 %v25, %v272
  %v314 = vmul.f32 %v26, %v273
  %v315 = vmul.f32 %v27, %v273
  %v316 = vmul.f32 %v28, %v274
  %v317 = vmul.f32 %v29, %v274
  %v318 = vmul.f32 %v30, %v275
  %v319 = vmul.f32 %v31, %v275
  %v320 = vmul.f32 %v32, %v276
  %v321 = vmul.f32 %v33, %v276
  %v322 = vmul.f32 %v34, %v277
  %v323 = vmul.f32 %v35, %v277
  %v324 = vmul.f32 %v36, %v278
  %v325 = vmul.f32 %v37, %v278
  %v326 = vmul.f32 %v38, %v279
  %v327 = vmul.f32 %v39, %v279
  %v328 = vmul.f32 %v40, %v280
  %v329 = vmul.f32 %v41, %v280
  %v330 = vmul.f32 %v42, %v281
  %v331 = vmul.f32 %v43, %v281
  %v332 = vmul.f32 %v44, %v282
  %v333 = vmul.f32 %v45, %v282
  %v334 = vmul.f32 %v46, %v283
  %v335 = vmul.f32 %v47, %v283
  %v336 = vmul.f32 %v48, %v284
  %v337 = vmul.f32 %v49, %v284
  %v338 = vmul.f32 %v50, %v285
  %v339 = vmul.f32 %v51, %v285
  %v340 = vmul.f32 %v52, %v286
  %v341 = vmul.f32 %v53, %v286
  %v342 = vmul.f32 %v54, %v287
  %v343 = vmul.f32 %v55, %v287
  %v344 = vmul.f32 %v56, %v288
  %v345 = vmul.f32 %v57, %v288
  %v346 = vmul.f32 %v58, %v289
  %v347 = vmul.f32 %v59, %v289
  %v348 = vmul.f32 %v60, %v290
  %v349 = vmul.f32 %v61, %v290
  %v350 = vmul.f32 %v62, %v291
  %v351 = vmul.f32 %v63, %v291
  %v352 = vmul.f32 %v64, %v292
  %v353 = vmul.f32 %v65, %v292
  %v354 = vmul.f32 %v66, %v293
  %v355 = vmul.f32 %v67, %v293
  %v356 = vmul.f32 %v68, %v294
  %v357 = vmul.f32 %v69, %v294
  %v358 = vmul.f32 %v70, %v295
  %v359 = vmul.f32 %v71, %v295
  %360 = vxpose.xlu0.b32.start [1/16] %v296, 128
  %361 = vxpose.xlu0.b32.cont [2/16] %v298, 128
  %362 = vxpose.xlu0.b32.cont [3/16] %v300, 128
  %363 = vxpose.xlu0.b32.cont [4/16] %v302, 128
  %364 = vxpose.xlu0.b32.cont [5/16] %v304, 128
  %365 = vxpose.xlu0.b32.cont [6/16] %v306, 128
  %366 = vxpose.xlu0.b32.cont [7/16] %v308, 128
  %367 = vxpose.xlu0.b32.cont [8/16] %v310, 128
  %368 = vxpose.xlu0.b32.cont [9/16] %v312, 128
  %369 = vxpose.xlu0.b32.cont [10/16] %v314, 128
  %370 = vxpose.xlu0.b32.cont [11/16] %v316, 128
  %371 = vxpose.xlu0.b32.cont [12/16] %v318, 128
  %372 = vxpose.xlu0.b32.cont [13/16] %v320, 128
  %373 = vxpose.xlu0.b32.cont [14/16] %v322, 128
  %374 = vxpose.xlu0.b32.cont [15/16] %v324, 128
  %375 = vxpose.xlu0.b32.end [16/16] %v326, 128
  %v376 = vpop.trf.xlu0
  %v377 = vpop.trf.xlu0
  %v378 = vpop.trf.xlu0
  %v379 = vpop.trf.xlu0
  %v380 = vpop.trf.xlu0
  %v381 = vpop.trf.xlu0
  %v382 = vpop.trf.xlu0
  %v383 = vpop.trf.xlu0
  %v384 = vpop.trf.xlu0
  %v385 = vpop.trf.xlu0
  %v386 = vpop.trf.xlu0
  %v387 = vpop.trf.xlu0
  %v388 = vpop.trf.xlu0
  %v389 = vpop.trf.xlu0
  %v390 = vpop.trf.xlu0
  %v391 = vpop.trf.xlu0
  %392 = vxpose.xlu0.b32.start [1/16] %v297, 128
  %393 = vxpose.xlu0.b32.cont [2/16] %v299, 128
  %394 = vxpose.xlu0.b32.cont [3/16] %v301, 128
  %395 = vxpose.xlu0.b32.cont [4/16] %v303, 128
  %396 = vxpose.xlu0.b32.cont [5/16] %v305, 128
  %397 = vxpose.xlu0.b32.cont [6/16] %v307, 128
  %398 = vxpose.xlu0.b32.cont [7/16] %v309, 128
  %399 = vxpose.xlu0.b32.cont [8/16] %v311, 128
  %400 = vxpose.xlu0.b32.cont [9/16] %v313, 128
  %401 = vxpose.xlu0.b32.cont [10/16] %v315, 128
  %402 = vxpose.xlu0.b32.cont [11/16] %v317, 128
  %403 = vxpose.xlu0.b32.cont [12/16] %v319, 128
  %404 = vxpose.xlu0.b32.cont [13/16] %v321, 128
  %405 = vxpose.xlu0.b32.cont [14/16] %v323, 128
  %406 = vxpose.xlu0.b32.cont [15/16] %v325, 128
  %407 = vxpose.xlu0.b32.end [16/16] %v327, 128
  %v408 = vpop.trf.xlu0
  %v409 = vpop.trf.xlu0
  %v410 = vpop.trf.xlu0
  %v411 = vpop.trf.xlu0
  %v412 = vpop.trf.xlu0
  %v413 = vpop.trf.xlu0
  %v414 = vpop.trf.xlu0
  %v415 = vpop.trf.xlu0
  %v416 = vpop.trf.xlu0
  %v417 = vpop.trf.xlu0
  %v418 = vpop.trf.xlu0
  %v419 = vpop.trf.xlu0
  %v420 = vpop.trf.xlu0
  %v421 = vpop.trf.xlu0
  %v422 = vpop.trf.xlu0
  %v423 = vpop.trf.xlu0
  %424 = vxpose.xlu0.b32.start [1/16] %v328, 128
  %425 = vxpose.xlu0.b32.cont [2/16] %v330, 128
  %426 = vxpose.xlu0.b32.cont [3/16] %v332, 128
  %427 = vxpose.xlu0.b32.cont [4/16] %v334, 128
  %428 = vxpose.xlu0.b32.cont [5/16] %v336, 128
  %429 = vxpose.xlu0.b32.cont [6/16] %v338, 128
  %430 = vxpose.xlu0.b32.cont [7/16] %v340, 128
  %431 = vxpose.xlu0.b32.cont [8/16] %v342, 128
  %432 = vxpose.xlu0.b32.cont [9/16] %v344, 128
  %433 = vxpose.xlu0.b32.cont [10/16] %v346, 128
  %434 = vxpose.xlu0.b32.cont [11/16] %v348, 128
  %435 = vxpose.xlu0.b32.cont [12/16] %v350, 128
  %436 = vxpose.xlu0.b32.cont [13/16] %v352, 128
  %437 = vxpose.xlu0.b32.cont [14/16] %v354, 128
  %438 = vxpose.xlu0.b32.cont [15/16] %v356, 128
  %439 = vxpose.xlu0.b32.end [16/16] %v358, 128
  %v440 = vpop.trf.xlu0
  %v441 = vpop.trf.xlu0
  %v442 = vpop.trf.xlu0
  %v443 = vpop.trf.xlu0
  %v444 = vpop.trf.xlu0
  %v445 = vpop.trf.xlu0
  %v446 = vpop.trf.xlu0
  %v447 = vpop.trf.xlu0
  %v448 = vpop.trf.xlu0
  %v449 = vpop.trf.xlu0
  %v450 = vpop.trf.xlu0
  %v451 = vpop.trf.xlu0
  %v452 = vpop.trf.xlu0
  %v453 = vpop.trf.xlu0
  %v454 = vpop.trf.xlu0
  %v455 = vpop.trf.xlu0
  %456 = vxpose.xlu0.b32.start [1/16] %v329, 128
  %457 = vxpose.xlu0.b32.cont [2/16] %v331, 128
  %458 = vxpose.xlu0.b32.cont [3/16] %v333, 128
  %459 = vxpose.xlu0.b32.cont [4/16] %v335, 128
  %460 = vxpose.xlu0.b32.cont [5/16] %v337, 128
  %461 = vxpose.xlu0.b32.cont [6/16] %v339, 128
  %462 = vxpose.xlu0.b32.cont [7/16] %v341, 128
  %463 = vxpose.xlu0.b32.cont [8/16] %v343, 128
  %464 = vxpose.xlu0.b32.cont [9/16] %v345, 128
  %465 = vxpose.xlu0.b32.cont [10/16] %v347, 128
  %466 = vxpose.xlu0.b32.cont [11/16] %v349, 128
  %467 = vxpose.xlu0.b32.cont [12/16] %v351, 128
  %468 = vxpose.xlu0.b32.cont [13/16] %v353, 128
  %469 = vxpose.xlu0.b32.cont [14/16] %v355, 128
  %470 = vxpose.xlu0.b32.cont [15/16] %v357, 128
  %471 = vxpose.xlu0.b32.end [16/16] %v359, 128
  %v472 = vpop.trf.xlu0
  %v473 = vpop.trf.xlu0
  %v474 = vpop.trf.xlu0
  %v475 = vpop.trf.xlu0
  %v476 = vpop.trf.xlu0
  %v477 = vpop.trf.xlu0
  %v478 = vpop.trf.xlu0
  %v479 = vpop.trf.xlu0
  %v480 = vpop.trf.xlu0
  %v481 = vpop.trf.xlu0
  %v482 = vpop.trf.xlu0
  %v483 = vpop.trf.xlu0
  %v484 = vpop.trf.xlu0
  %v485 = vpop.trf.xlu0
  %v486 = vpop.trf.xlu0
  %v487 = vpop.trf.xlu0
  %v488 = vpack.c.bf16 %v377, %v376
  %v489 = vpack.c.bf16 %v441, %v440
  %v490 = vpack.c.bf16 %v379, %v378
  %v491 = vpack.c.bf16 %v443, %v442
  %v492 = vpack.c.bf16 %v381, %v380
  %v493 = vpack.c.bf16 %v445, %v444
  %v494 = vpack.c.bf16 %v383, %v382
  %v495 = vpack.c.bf16 %v447, %v446
  %v496 = vpack.c.bf16 %v385, %v384
  %v497 = vpack.c.bf16 %v449, %v448
  %v498 = vpack.c.bf16 %v387, %v386
  %v499 = vpack.c.bf16 %v451, %v450
  %v500 = vpack.c.bf16 %v389, %v388
  %v501 = vpack.c.bf16 %v453, %v452
  %v502 = vpack.c.bf16 %v391, %v390
  %v503 = vpack.c.bf16 %v455, %v454
  %v504 = vpack.c.bf16 %v409, %v408
  %v505 = vpack.c.bf16 %v473, %v472
  %v506 = vpack.c.bf16 %v411, %v410
  %v507 = vpack.c.bf16 %v475, %v474
  %v508 = vpack.c.bf16 %v413, %v412
  %v509 = vpack.c.bf16 %v477, %v476
  %v510 = vpack.c.bf16 %v415, %v414
  %v511 = vpack.c.bf16 %v479, %v478
  %v512 = vpack.c.bf16 %v417, %v416
  %v513 = vpack.c.bf16 %v481, %v480
  %v514 = vpack.c.bf16 %v419, %v418
  %v515 = vpack.c.bf16 %v483, %v482
  %v516 = vpack.c.bf16 %v421, %v420
  %v517 = vpack.c.bf16 %v485, %v484
  %v518 = vpack.c.bf16 %v423, %v422
  %v519 = vpack.c.bf16 %v487, %v486
  %v552 = vunpack.c.l.b16 %v488
  %v553 = vunpack.c.l.b16 %v489
  %v554 = vunpack.c.h.b16 %v488
  %v555 = vunpack.c.h.b16 %v489
  %v556 = vunpack.c.l.b16 %v490
  %v557 = vunpack.c.l.b16 %v491
  %v558 = vunpack.c.h.b16 %v490
  %v559 = vunpack.c.h.b16 %v491
  %v560 = vunpack.c.l.b16 %v492
  %v561 = vunpack.c.l.b16 %v493
  %v562 = vunpack.c.h.b16 %v492
  %v563 = vunpack.c.h.b16 %v493
  %v564 = vunpack.c.l.b16 %v494
  %v565 = vunpack.c.l.b16 %v495
  %v566 = vunpack.c.h.b16 %v494
  %v567 = vunpack.c.h.b16 %v495
  %v568 = vunpack.c.l.b16 %v496
  %v569 = vunpack.c.l.b16 %v497
  %v570 = vunpack.c.h.b16 %v496
  %v571 = vunpack.c.h.b16 %v497
  %v572 = vunpack.c.l.b16 %v498
  %v573 = vunpack.c.l.b16 %v499
  %v574 = vunpack.c.h.b16 %v498
  %v575 = vunpack.c.h.b16 %v499
  %v576 = vunpack.c.l.b16 %v500
  %v577 = vunpack.c.l.b16 %v501
  %v578 = vunpack.c.h.b16 %v500
  %v579 = vunpack.c.h.b16 %v501
  %v580 = vunpack.c.l.b16 %v502
  %v581 = vunpack.c.l.b16 %v503
  %v582 = vunpack.c.h.b16 %v502
  %v583 = vunpack.c.h.b16 %v503
  %v584 = vunpack.c.l.b16 %v504
  %v585 = vunpack.c.l.b16 %v505
  %v586 = vunpack.c.h.b16 %v504
  %v587 = vunpack.c.h.b16 %v505
  %v588 = vunpack.c.l.b16 %v506
  %v589 = vunpack.c.l.b16 %v507
  %v590 = vunpack.c.h.b16 %v506
  %v591 = vunpack.c.h.b16 %v507
  %v592 = vunpack.c.l.b16 %v508
  %v593 = vunpack.c.l.b16 %v509
  %v594 = vunpack.c.h.b16 %v508
  %v595 = vunpack.c.h.b16 %v509
  %v596 = vunpack.c.l.b16 %v510
  %v597 = vunpack.c.l.b16 %v511
  %v598 = vunpack.c.h.b16 %v510
  %v599 = vunpack.c.h.b16 %v511
  %v600 = vunpack.c.l.b16 %v512
  %v601 = vunpack.c.l.b16 %v513
  %v602 = vunpack.c.h.b16 %v512
  %v603 = vunpack.c.h.b16 %v513
  %v604 = vunpack.c.l.b16 %v514
  %v605 = vunpack.c.l.b16 %v515
  %v606 = vunpack.c.h.b16 %v514
  %v607 = vunpack.c.h.b16 %v515
  %v608 = vunpack.c.l.b16 %v516
  %v609 = vunpack.c.l.b16 %v517
  %v610 = vunpack.c.h.b16 %v516
  %v611 = vunpack.c.h.b16 %v517
  %v612 = vunpack.c.l.b16 %v518
  %v613 = vunpack.c.l.b16 %v519
  %v614 = vunpack.c.h.b16 %v518
  %v615 = vunpack.c.h.b16 %v519
  %v616 = vpack.c.b16 %v553, %v552
  %v617 = vpack.c.b16 %v555, %v554
  %v618 = vpack.c.b16 %v557, %v556
  %v619 = vpack.c.b16 %v559, %v558
  %v620 = vpack.c.b16 %v561, %v560
  %v621 = vpack.c.b16 %v563, %v562
  %v622 = vpack.c.b16 %v565, %v564
  %v623 = vpack.c.b16 %v567, %v566
  %v624 = vpack.c.b16 %v569, %v568
  %v625 = vpack.c.b16 %v571, %v570
  %v626 = vpack.c.b16 %v573, %v572
  %v627 = vpack.c.b16 %v575, %v574
  %v628 = vpack.c.b16 %v577, %v576
  %v629 = vpack.c.b16 %v579, %v578
  %v630 = vpack.c.b16 %v581, %v580
  %v631 = vpack.c.b16 %v583, %v582
  %v632 = vpack.c.b16 %v585, %v584
  %v633 = vpack.c.b16 %v587, %v586
  %v634 = vpack.c.b16 %v589, %v588
  %v635 = vpack.c.b16 %v591, %v590
  %v636 = vpack.c.b16 %v593, %v592
  %v637 = vpack.c.b16 %v595, %v594
  %v638 = vpack.c.b16 %v597, %v596
  %v639 = vpack.c.b16 %v599, %v598
  %v640 = vpack.c.b16 %v601, %v600
  %v641 = vpack.c.b16 %v603, %v602
  %v642 = vpack.c.b16 %v605, %v604
  %v643 = vpack.c.b16 %v607, %v606
  %v644 = vpack.c.b16 %v609, %v608
  %v645 = vpack.c.b16 %v611, %v610
  %v646 = vpack.c.b16 %v613, %v612
  %v647 = vpack.c.b16 %v615, %v614
  %680 = vst [vmem:[%s1] sm:$0xff] %v616
  %681 = vst [vmem:[%s1 + $0x8] sm:$0xff] %v617
  %682 = vst [vmem:[%s1 + $0x10] sm:$0xff] %v618
  %683 = vst [vmem:[%s1 + $0x18] sm:$0xff] %v619
  %684 = vst [vmem:[%s1 + $0x20] sm:$0xff] %v620
  %685 = vst [vmem:[%s1 + $0x28] sm:$0xff] %v621
  %686 = vst [vmem:[%s1 + $0x30] sm:$0xff] %v622
  %687 = vst [vmem:[%s1 + $0x38] sm:$0xff] %v623
  %688 = vst [vmem:[%s1 + $0x40] sm:$0xff] %v624
  %689 = vst [vmem:[%s1 + $0x48] sm:$0xff] %v625
  %690 = vst [vmem:[%s1 + $0x50] sm:$0xff] %v626
  %691 = vst [vmem:[%s1 + $0x58] sm:$0xff] %v627
  %692 = vst [vmem:[%s1 + $0x60] sm:$0xff] %v628
  %693 = vst [vmem:[%s1 + $0x68] sm:$0xff] %v629
  %694 = vst [vmem:[%s1 + $0x70] sm:$0xff] %v630
  %695 = vst [vmem:[%s1 + $0x78] sm:$0xff] %v631
  %696 = vst [vmem:[%s1 + $0x80] sm:$0xff] %v632
  %697 = vst [vmem:[%s1 + $0x88] sm:$0xff] %v633
  %698 = vst [vmem:[%s1 + $0x90] sm:$0xff] %v634
  %699 = vst [vmem:[%s1 + $0x98] sm:$0xff] %v635
  %700 = vst [vmem:[%s1 + $0xa0] sm:$0xff] %v636
  %701 = vst [vmem:[%s1 + $0xa8] sm:$0xff] %v637
  %702 = vst [vmem:[%s1 + $0xb0] sm:$0xff] %v638
  %703 = vst [vmem:[%s1 + $0xb8] sm:$0xff] %v639
  %704 = vst [vmem:[%s1 + $0xc0] sm:$0xff] %v640
  %705 = vst [vmem:[%s1 + $0xc8] sm:$0xff] %v641
  %706 = vst [vmem:[%s1 + $0xd0] sm:$0xff] %v642
  %707 = vst [vmem:[%s1 + $0xd8] sm:$0xff] %v643
  %708 = vst [vmem:[%s1 + $0xe0] sm:$0xff] %v644
  %709 = vst [vmem:[%s1 + $0xe8] sm:$0xff] %v645
  %710 = vst [vmem:[%s1 + $0xf0] sm:$0xff] %v646
  %711 = vst [vmem:[%s1 + $0xf8] sm:$0xff] %v647
  // Predicated region
  $region6: #{cosface_forward.4} parent=0 // pred_check
    _
  $region7: #{cosface_forward.4} parent=0 // pred_check_branch
    %713 = sbr.rel (0) target = $region9
  $region8: #{cosface_forward.4} parent=0 // pred_region
    _
  $region9: #{cosface_forward.4} parent=0 // pred_fallthru
    _
  // Predicated region
  $region10: #{cosface_forward.4} parent=0 // pred_check
    _
  $region11: #{cosface_forward.4} parent=0 // pred_check_branch
    %715 = sbr.rel (0) target = $region13
  $region12: #{cosface_forward.4} parent=0 // pred_region
    _
  $region13: #{cosface_forward.4} parent=0 // pred_fallthru
    _

// kernel: cosface_forward.5
$region0: #{cosface_forward.5}
  #allocation0 [shape = 'u32[]', space=smem, size = 0x4, offset = 0x4, fixed_abs, tag = 'smem constant byte address 0x4 - core index']
  #allocation1 [shape = 'u32[144,128]{1,0:T(1,128)}', space=vmem, size = 0x12000, scoped, tag = 'internal scratch']
  %s0 = inlined_call_operand.vmem [shape: bf16[16,256], index: 0, kind: input, shape index: {}]
  %s1 = inlined_call_operand.vmem [shape: s32[16,1], index: 1, kind: input, shape index: {}]
  %s2 = inlined_call_operand.vmem [shape: bf16[256,256], index: 2, kind: input, shape index: {}]
  %s3 = inlined_call_operand.vmem [shape: f32[16,256], index: 3, kind: output, shape index: {}]
  %s4 = sld [smem:[#allocation0]]
  $region22: #{cosface_forward.5} parent=0
    _
  %s6 = ssub.s32 1, %s4
  %s7 = scalar_select 0, %s6, %s4
  // Predicated region
  $region2: #{cosface_forward.5} parent=0 // pred_check
    _
  $region3: #{cosface_forward.5} parent=0 // pred_check_branch
    %9 = sbr.rel (0) target = $region5
  $region4: #{cosface_forward.5} parent=0 // pred_region
    _
  $region5: #{cosface_forward.5} parent=0 // pred_fallthru
    _
  // Predicated region
  $region6: #{cosface_forward.5} parent=0 // pred_check
    _
  $region7: #{cosface_forward.5} parent=0 // pred_check_branch
    %11 = sbr.rel (0) target = $region9
  $region8: #{cosface_forward.5} parent=0 // pred_region
    _
  $region9: #{cosface_forward.5} parent=0 // pred_fallthru
    _
  // Predicated region
  $region10: #{cosface_forward.5} parent=0 // pred_check
    _
  $region11: #{cosface_forward.5} parent=0 // pred_check_branch
    %13 = sbr.rel (0) target = $region13
  $region12: #{cosface_forward.5} parent=0 // pred_region
    _
  $region13: #{cosface_forward.5} parent=0 // pred_fallthru
    _
  %v14 = vld [vmem:[%s0] sm:$0xff]
  %v15 = vld [vmem:[%s0 + $0x8] sm:$0xff]
  %v16 = vld [vmem:[%s2] sm:$0xff]
  %v17 = vld [vmem:[%s2 + $0x8] sm:$0xff]
  %v18 = vld [vmem:[%s2 + $0x10] sm:$0xff]
  %v19 = vld [vmem:[%s2 + $0x18] sm:$0xff]
  %v20 = vld [vmem:[%s2 + $0x20] sm:$0xff]
  %v21 = vld [vmem:[%s2 + $0x28] sm:$0xff]
  %v22 = vld [vmem:[%s2 + $0x30] sm:$0xff]
  %v23 = vld [vmem:[%s2 + $0x38] sm:$0xff]
  %v24 = vld [vmem:[%s2 + $0x40] sm:$0xff]
  %v25 = vld [vmem:[%s2 + $0x48] sm:$0xff]
  %v26 = vld [vmem:[%s2 + $0x50] sm:$0xff]
  %v27 = vld [vmem:[%s2 + $0x58] sm:$0xff]
  %v28 = vld [vmem:[%s2 + $0x60] sm:$0xff]
  %v29 = vld [vmem:[%s2 + $0x68] sm:$0xff]
  %v30 = vld [vmem:[%s2 + $0x70] sm:$0xff]
  %v31 = vld [vmem:[%s2 + $0x78] sm:$0xff]
  %v32 = vld [vmem:[%s2 + $0x80] sm:$0xff]
  %v33 = vld [vmem:[%s2 + $0x88] sm:$0xff]
  %v34 = vld [vmem:[%s2 + $0x90] sm:$0xff]
  %v35 = vld [vmem:[%s2 + $0x98] sm:$0xff]
  %v36 = vld [vmem:[%s2 + $0xa0] sm:$0xff]
  %v37 = vld [vmem:[%s2 + $0xa8] sm:$0xff]
  %v38 = vld [vmem:[%s2 + $0xb0] sm:$0xff]
  %v39 = vld [vmem:[%s2 + $0xb8] sm:$0xff]
  %v40 = vld [vmem:[%s2 + $0xc0] sm:$0xff]
  %v41 = vld [vmem:[%s2 + $0xc8] sm:$0xff]
  %v42 = vld [vmem:[%s2 + $0xd0] sm:$0xff]
  %v43 = vld [vmem:[%s2 + $0xd8] sm:$0xff]
  %v44 = vld [vmem:[%s2 + $0xe0] sm:$0xff]
  %v45 = vld [vmem:[%s2 + $0xe8] sm:$0xff]
  %v46 = vld [vmem:[%s2 + $0xf0] sm:$0xff]
  %v47 = vld [vmem:[%s2 + $0xf8] sm:$0xff]
  %v50 = vunpack.c.l.b16 %v14
  %v51 = vunpack.c.h.b16 %v14
  %v52 = vunpack.c.l.b16 %v15
  %v53 = vunpack.c.h.b16 %v15
  %v54 = vpack.c.b16 %v52, %v50
  %v55 = vpack.c.b16 %v53, %v51
  %v90 = vunpack.c.l.b16 %v16
  %v91 = vunpack.c.h.b16 %v16
  %v92 = vunpack.c.l.b16 %v17
  %v93 = vunpack.c.h.b16 %v17
  %v94 = vunpack.c.l.b16 %v18
  %v95 = vunpack.c.h.b16 %v18
  %v96 = vunpack.c.l.b16 %v19
  %v97 = vunpack.c.h.b16 %v19
  %v98 = vunpack.c.l.b16 %v20
  %v99 = vunpack.c.h.b16 %v20
  %v100 = vunpack.c.l.b16 %v21
  %v101 = vunpack.c.h.b16 %v21
  %v102 = vunpack.c.l.b16 %v22
  %v103 = vunpack.c.h.b16 %v22
  %v104 = vunpack.c.l.b16 %v23
  %v105 = vunpack.c.h.b16 %v23
  %v106 = vunpack.c.l.b16 %v24
  %v107 = vunpack.c.h.b16 %v24
  %v108 = vunpack.c.l.b16 %v25
  %v109 = vunpack.c.h.b16 %v25
  %v110 = vunpack.c.l.b16 %v26
  %v111 = vunpack.c.h.b16 %v26
  %v112 = vunpack.c.l.b16 %v27
  %v113 = vunpack.c.h.b16 %v27
  %v114 = vunpack.c.l.b16 %v28
  %v115 = vunpack.c.h.b16 %v28
  %v116 = vunpack.c.l.b16 %v29
  %v117 = vunpack.c.h.b16 %v29
  %v118 = vunpack.c.l.b16 %v30
  %v119 = vunpack.c.h.b16 %v30
  %v120 = vunpack.c.l.b16 %v31
  %v121 = vunpack.c.h.b16 %v31
  %v122 = vunpack.c.l.b16 %v32
  %v123 = vunpack.c.h.b16 %v32
  %v124 = vunpack.c.l.b16 %v33
  %v125 = vunpack.c.h.b16 %v33
  %v126 = vunpack.c.l.b16 %v34
  %v127 = vunpack.c.h.b16 %v34
  %v128 = vunpack.c.l.b16 %v35
  %v129 = vunpack.c.h.b16 %v35
  %v130 = vunpack.c.l.b16 %v36
  %v131 = vunpack.c.h.b16 %v36
  %v132 = vunpack.c.l.b16 %v37
  %v133 = vunpack.c.h.b16 %v37
  %v134 = vunpack.c.l.b16 %v38
  %v135 = vunpack.c.h.b16 %v38
  %v136 = vunpack.c.l.b16 %v39
  %v137 = vunpack.c.h.b16 %v39
  %v138 = vunpack.c.l.b16 %v40
  %v139 = vunpack.c.h.b16 %v40
  %v140 = vunpack.c.l.b16 %v41
  %v141 = vunpack.c.h.b16 %v41
  %v142 = vunpack.c.l.b16 %v42
  %v143 = vunpack.c.h.b16 %v42
  %v144 = vunpack.c.l.b16 %v43
  %v145 = vunpack.c.h.b16 %v43
  %v146 = vunpack.c.l.b16 %v44
  %v147 = vunpack.c.h.b16 %v44
  %v148 = vunpack.c.l.b16 %v45
  %v149 = vunpack.c.h.b16 %v45
  %v150 = vunpack.c.l.b16 %v46
  %v151 = vunpack.c.h.b16 %v46
  %v152 = vunpack.c.l.b16 %v47
  %v153 = vunpack.c.h.b16 %v47
  %v154 = vpack.c.b16 %v92, %v90
  %v155 = vpack.c.b16 %v93, %v91
  %v156 = vpack.c.b16 %v96, %v94
  %v157 = vpack.c.b16 %v97, %v95
  %v158 = vpack.c.b16 %v100, %v98
  %v159 = vpack.c.b16 %v101, %v99
  %v160 = vpack.c.b16 %v104, %v102
  %v161 = vpack.c.b16 %v105, %v103
  %v162 = vpack.c.b16 %v108, %v106
  %v163 = vpack.c.b16 %v109, %v107
  %v164 = vpack.c.b16 %v112, %v110
  %v165 = vpack.c.b16 %v113, %v111
  %v166 = vpack.c.b16 %v116, %v114
  %v167 = vpack.c.b16 %v117, %v115
  %v168 = vpack.c.b16 %v120, %v118
  %v169 = vpack.c.b16 %v121, %v119
  %v170 = vpack.c.b16 %v124, %v122
  %v171 = vpack.c.b16 %v125, %v123
  %v172 = vpack.c.b16 %v128, %v126
  %v173 = vpack.c.b16 %v129, %v127
  %v174 = vpack.c.b16 %v132, %v130
  %v175 = vpack.c.b16 %v133, %v131
  %v176 = vpack.c.b16 %v136, %v134
  %v177 = vpack.c.b16 %v137, %v135
  %v178 = vpack.c.b16 %v140, %v138
  %v179 = vpack.c.b16 %v141, %v139
  %v180 = vpack.c.b16 %v144, %v142
  %v181 = vpack.c.b16 %v145, %v143
  %v182 = vpack.c.b16 %v148, %v146
  %v183 = vpack.c.b16 %v149, %v147
  %v184 = vpack.c.b16 %v152, %v150
  %v185 = vpack.c.b16 %v153, %v151
  %218 = vmatprep.subr.bf16.mxu0 %v155
  %219 = vmatpush1.bf16.msra.mxu0 %v154
  %220 = vmatprep.subr.bf16.mxu0 %v157
  %221 = vmatpush1.bf16.msra.mxu0 %v156
  %222 = vmatprep.subr.bf16.mxu0 %v159
  %223 = vmatpush1.bf16.msra.mxu0 %v158
  %224 = vmatprep.subr.bf16.mxu0 %v161
  %225 = vmatpush1.bf16.msra.mxu0 %v160
  %226 = vmatprep.subr.bf16.mxu0 %v163
  %227 = vmatpush1.bf16.msra.mxu0 %v162
  %228 = vmatprep.subr.bf16.mxu0 %v165
  %229 = vmatpush1.bf16.msra.mxu0 %v164
  %230 = vmatprep.subr.bf16.mxu0 %v167
  %231 = vmatpush1.bf16.msra.mxu0 %v166
  %232 = vmatprep.subr.bf16.mxu0 %v169
  %233 = vmatpush1.bf16.msra.mxu0 %v168
  %234 = vmatprep.subr.bf16.mxu0 %v171
  %235 = vmatpush1.bf16.msra.mxu0 %v170
  %236 = vmatprep.subr.bf16.mxu0 %v173
  %237 = vmatpush1.bf16.msra.mxu0 %v172
  %238 = vmatprep.subr.bf16.mxu0 %v175
  %239 = vmatpush1.bf16.msra.mxu0 %v174
  %240 = vmatprep.subr.bf16.mxu0 %v177
  %241 = vmatpush1.bf16.msra.mxu0 %v176
  %242 = vmatprep.subr.bf16.mxu0 %v179
  %243 = vmatpush1.bf16.msra.mxu0 %v178
  %244 = vmatprep.subr.bf16.mxu0 %v181
  %245 = vmatpush1.bf16.msra.mxu0 %v180
  %246 = vmatprep.subr.bf16.mxu0 %v183
  %247 = vmatpush1.bf16.msra.mxu0 %v182
  %248 = vmatprep.subr.bf16.mxu0 %v185
  %249 = vmatpush1.bf16.msra.mxu0 %v184
  %250 = vmatprep.mubr.bf16.mxu0 %v55
  %251 = vmatmul.mubr.bf16.gmra.mrb[0].mxu0 %v54
  %v252 = vpop.f32.mrb[0].mxu0
  %v253 = vadd.f32 0.0, %v252
  %v254 = vpop.f32.mrb[0].mxu0
  %v255 = vadd.f32 0.0, %v254
  %v256 = vpop.f32.mrb[0].mxu0
  %v257 = vadd.f32 0.0, %v256
  %v258 = vpop.f32.mrb[0].mxu0
  %v259 = vadd.f32 0.0, %v258
  %260 = vdwg.mxu0
  %v261 = vlaneseq
  %v262 = vand.u32 %v261, 127
  %v263 = vadd.s32 %v262, 128
  %s264 = smul.u32 0, 256
  %v265 = vstv %s264
  %v266 = vadd.s32 %v262, %v265
  %v267 = vadd.s32 %v263, %v265
  %v268 = vld [vmem:[%s1] sm:$0xff]
  %v269 = vld [vmem:[%s1 + $0x8] sm:$0xff]
  %270 = vset.pattern.permute.xlu0 0
  %271 = vperm.xlu0 %270, %v268
  %v272 = vpop.permute.xlu0 %271
  %273 = vset.pattern.permute.xlu0 0
  %274 = vperm.xlu0 %273, %v269
  %v275 = vpop.permute.xlu0 %274
  %vm276 = vcmp.eq.s32.totalorder %v266, %v272
  %vm277 = vcmp.eq.s32.totalorder %v267, %v272
  %vm278 = vcmp.eq.s32.totalorder %v266, %v275
  %vm279 = vcmp.eq.s32.totalorder %v267, %v275
  %v280 = vsel %vm276, 1, 0
  %v281 = vsel %vm277, 1, 0
  %v282 = vsel %vm278, 1, 0
  %v283 = vsel %vm279, 1, 0
  %v284 = vcvt.s32.f32 %v280
  %v285 = vcvt.s32.f32 %v281
  %v286 = vcvt.s32.f32 %v282
  %v287 = vcvt.s32.f32 %v283
  %v288 = vmul.f32 %v284, 0.35
  %v289 = vmul.f32 %v285, 0.35
  %v290 = vmul.f32 %v286, 0.35
  %v291 = vmul.f32 %v287, 0.35
  %v292 = vsub.f32 %v253, %v288
  %v293 = vsub.f32 %v255, %v289
  %v294 = vsub.f32 %v257, %v290
  %v295 = vsub.f32 %v259, %v291
  %v296 = vmul.f32 %v292, 64.0
  %v297 = vmul.f32 %v293, 64.0
  %v298 = vmul.f32 %v294, 64.0
  %v299 = vmul.f32 %v295, 64.0
  %300 = vst [vmem:[%s3] sm:$0xff] %v296
  %301 = vst [vmem:[%s3 + $0x8] sm:$0xff] %v297
  %302 = vst [vmem:[%s3 + $0x10] sm:$0xff] %v298
  %303 = vst [vmem:[%s3 + $0x18] sm:$0xff] %v299
  // Predicated region
  $region14: #{cosface_forward.5} parent=0 // pred_check
    _
  $region15: #{cosface_forward.5} parent=0 // pred_check_branch
    %305 = sbr.rel (0) target = $region17
  $region16: #{cosface_forward.5} parent=0 // pred_region
    _
  $region17: #{cosface_forward.5} parent=0 // pred_fallthru
    _
  // Predicated region
  $region18: #{cosface_forward.5} parent=0 // pred_check
    _
  $region19: #{cosface_forward.5} parent=0 // pred_check_branch
    %307 = sbr.rel (0) target = $region21
  $region20: #{cosface_forward.5} parent=0 // pred_region
    _
  $region21: #{cosface_forward.5} parent=0 // pred_fallthru
    _

</llo_original>
